<compile_context>
chip_gen: v5e
topology: v5e:2x2
jax: 0.10.0
libtpu: 0.0.40
codegen_flags: <defaults>
</compile_context>

<pallas_src>
import functools

import jax
import jax.numpy as jnp
import numpy as np
from jax import lax
from jax.experimental import pallas as pl
from jax.experimental.pallas import tpu as pltpu


_F32 = jnp.float32
_PARALLEL_1D = pltpu.CompilerParams(dimension_semantics=("parallel",))


# ----------------------------------------------------------------------------
# Pallas kernels
# ----------------------------------------------------------------------------

def _dw_kernel(w_ref, xpar_ref, o_ref, *, C, Ho, Wo):
    """Depthwise 3x3 stride-2 conv; taps read as static slices of the parity blocks.

    w_ref:    (9, C, 1, 1)  tap weights, tap index k = dy*3 + dx.
    xpar_ref: (4*C, Ho+1, Wo+1) parity blocks of the padded input, parity p = (dy%2)*2+(dx%2)
              in channel block [p*C : (p+1)*C].
    """
    w = w_ref[...]
    xp = xpar_ref[...]
    acc = None
    for dy in range(3):
        for dx in range(3):
            par = (dy % 2) * 2 + (dx % 2)
            r, c = dy // 2, dx // 2
            tap = xp[par * C:(par + 1) * C, r:r + Ho, c:c + Wo]     # (C, Ho, Wo)
            term = tap * w[dy * 3 + dx]                             # (C,1,1) bcast
            acc = term if acc is None else acc + term
    o_ref[...] = acc.astype(o_ref.dtype)


def _sgcn_kernel(wk_ref, bk_ref, wv_ref, bv_ref, wq_ref, bq_ref,
                 wwg_ref, bwg_ref, wout_ref, bout_ref, x_ref, o_ref):
    """Fused SpatialGCN: q/k/v projections, softmax attention, conv_wg+BN(folded),
    out-conv + residual + relu.  All per batch element, intermediates never leave VMEM."""
    x = x_ref[...]                                                  # (C, L)
    nk = jnp.dot(wk_ref[...], x, preferred_element_type=_F32) + bk_ref[...]
    nv = jnp.dot(wv_ref[...], x, preferred_element_type=_F32) + bv_ref[...]
    nq = jnp.dot(wq_ref[...], x, preferred_element_type=_F32) + bq_ref[...]
    # S = q @ v^T  -> softmax rows
    s = lax.dot_general(nq, nv, (((1,), (1,)), ((), ())),
                        preferred_element_type=_F32)                # (c, c)
    s = s - jnp.max(s, axis=-1, keepdims=True)
    e = jnp.exp(s)
    p = e * pl.reciprocal(jnp.sum(e, axis=-1, keepdims=True), approx=True)
    # AV = P^T @ k
    av = lax.dot_general(p, nk, (((0,), (0,)), ((), ())),
                         preferred_element_type=_F32)               # (c, L)
    avw = jnp.dot(wwg_ref[...], av, preferred_element_type=_F32) + bwg_ref[...]
    out = jnp.dot(wout_ref[...], avw, preferred_element_type=_F32) + bout_ref[...] + x
    o_ref[...] = jnp.maximum(out, 0.0).astype(o_ref.dtype)


def _graph_kernel(wphi_ref, wtheta_ref, wadjT_ref, ba_ref, wwg_ref, bw_ref,
                  wc3_ref, x_ref, o_ref):
    """Fused graph branch: phi/theta, z_idt, adjacency block (BN folded), y,
    conv3 + residual + relu — one kernel per batch element."""
    x = x_ref[...]                                                  # (C, HW)
    xs = jnp.dot(wphi_ref[...], x, preferred_element_type=_F32)     # (C2, HW)
    bmat = jnp.dot(wtheta_ref[...], x, preferred_element_type=_F32)  # (C1, HW)
    # z_idt = x_sqz @ b^T
    z_idt = lax.dot_general(xs, bmat, (((1,), (1,)), ((), ())),
                            preferred_element_type=_F32)            # (C2, C1)
    # z = bn_adj(conv_adj(z_idt^T))^T + z_idt   (scale folded into wadjT)
    z = jnp.dot(z_idt, wadjT_ref[...], preferred_element_type=_F32) + ba_ref[...] + z_idt
    # z = bn_wg(conv_wg(z))                     (scale folded into wwg)
    z = jnp.dot(wwg_ref[...], z, preferred_element_type=_F32) + bw_ref[...]
    y = jnp.dot(z, bmat, preferred_element_type=_F32)               # (C2, HW)
    g = jnp.dot(wc3_ref[...], y, preferred_element_type=_F32) + x
    o_ref[...] = jnp.maximum(g, 0.0).astype(o_ref.dtype)


def _final_kernel(at_ref, w1_ref, w2_ref, loc_ref, x_ref, g_ref, o_ref):
    """Fused: bilinear upsample (loc @ A^T, A = kron(Ah, Aw)), x*up + x, and the
    final split 1x1 conv: out = W1 @ spatial_local + W2 @ g_out.  Lane-dense output."""
    up = jnp.dot(loc_ref[...], at_ref[...], preferred_element_type=_F32)   # (C, HW)
    x = x_ref[...]
    slf = x * up + x
    out = (jnp.dot(w1_ref[...], slf, preferred_element_type=_F32)
           + jnp.dot(w2_ref[...], g_ref[...], preferred_element_type=_F32))
    o_ref[...] = out.astype(o_ref.dtype)


# ----------------------------------------------------------------------------
# Pallas wrappers
# ----------------------------------------------------------------------------

def depthwise_s2(x, w_taps):
    """Depthwise 3x3 conv, stride 2, padding 1, no bias.

    x: (N, C, H, W) with H, W even;  w_taps: (9, C, 1, 1), tap k = dy*3 + dx.
    Only a 1x-sized parity re-layout of the padded input goes through HBM (vs. the
    previous 9x tap blow-up); the 9 MACs happen in-kernel.
    """
    N, C, H, W = x.shape
    assert H % 2 == 0 and W % 2 == 0
    Ho = (H + 2 - 3) // 2 + 1
    Wo = (W + 2 - 3) // 2 + 1
    xpad = jnp.pad(x, ((0, 0), (0, 0), (1, 1), (1, 1)))
    # parity split (JAX glue): [ee, eo, oe, oo] stacked along channels
    parts = [xpad[:, :, a::2, b::2] for a in (0, 1) for b in (0, 1)]
    xpar = jnp.concatenate(parts, axis=1)                 # (N, 4*C, Ho+1, Wo+1)
    Hh, Wh = xpar.shape[2], xpar.shape[3]

    return pl.pallas_call(
        functools.partial(_dw_kernel, C=C, Ho=Ho, Wo=Wo),
        out_shape=jax.ShapeDtypeStruct((N, C, Ho, Wo), jnp.float32),
        grid=(N,),
        in_specs=[
            pl.BlockSpec((9, C, 1, 1), lambda n: (0, 0, 0, 0)),
            pl.BlockSpec((pl.Squeezed(), 4 * C, Hh, Wh), lambda n: (n, 0, 0, 0)),
        ],
        out_specs=pl.BlockSpec((pl.Squeezed(), C, Ho, Wo), lambda n: (n, 0, 0, 0)),
        compiler_params=_PARALLEL_1D,
    )(w_taps, xpar)


def spatial_gcn(xl, wk, bk, wv, bv, wq, bq, wwg, bwg, wout, bout):
    N, C, L = xl.shape
    act_spec = pl.BlockSpec((pl.Squeezed(), C, L), lambda n: (n, 0, 0))
    const = lambda shape: pl.BlockSpec(shape, lambda n: (0, 0))
    return pl.pallas_call(
        _sgcn_kernel,
        out_shape=jax.ShapeDtypeStruct((N, C, L), jnp.float32),
        grid=(N,),
        in_specs=[const(wk.shape), const(bk.shape), const(wv.shape), const(bv.shape),
                  const(wq.shape), const(bq.shape), const(wwg.shape), const(bwg.shape),
                  const(wout.shape), const(bout.shape), act_spec],
        out_specs=act_spec,
        compiler_params=_PARALLEL_1D,
    )(wk, bk, wv, bv, wq, bq, wwg, bwg, wout, bout, xl)


def graph_branch(x, wphi, wtheta, wadjT, ba, wwg, bw, wc3):
    N, C, HW = x.shape
    act_spec = pl.BlockSpec((pl.Squeezed(), C, HW), lambda n: (n, 0, 0))
    const = lambda shape: pl.BlockSpec(shape, lambda n: (0, 0))
    return pl.pallas_call(
        _graph_kernel,
        out_shape=jax.ShapeDtypeStruct((N, C, HW), jnp.float32),
        grid=(N,),
        in_specs=[const(wphi.shape), const(wtheta.shape), const(wadjT.shape),
                  const(ba.shape), const(wwg.shape), const(bw.shape),
                  const(wc3.shape), act_spec],
        out_specs=act_spec,
        compiler_params=_PARALLEL_1D,
    )(wphi, wtheta, wadjT, ba, wwg, bw, wc3, x)


def final_fuse(At, w1, w2, loc, x, g):
    N, C, HW = x.shape
    ls = At.shape[0]
    outc = w1.shape[0]
    act_spec = pl.BlockSpec((pl.Squeezed(), C, HW), lambda n: (n, 0, 0))
    const = lambda shape: pl.BlockSpec(shape, lambda n: (0, 0))
    return pl.pallas_call(
        _final_kernel,
        out_shape=jax.ShapeDtypeStruct((N, outc, HW), jnp.float32),
        grid=(N,),
        in_specs=[const(At.shape), const(w1.shape), const(w2.shape),
                  pl.BlockSpec((pl.Squeezed(), C, ls), lambda n: (n, 0, 0)),
                  act_spec, act_spec],
        out_specs=pl.BlockSpec((pl.Squeezed(), outc, HW), lambda n: (n, 0, 0)),
        compiler_params=_PARALLEL_1D,
    )(At, w1, w2, loc, x, g)


# ----------------------------------------------------------------------------
# Parameter initialization + BN folding (deterministic, synthetic)
# ----------------------------------------------------------------------------

def _bn_fold(key, c, eps=1e-5):
    k1, k2, k3, k4 = jax.random.split(key, 4)
    gamma = 1.0 + 0.1 * jax.random.normal(k1, (c,), jnp.float32)
    beta = 0.1 * jax.random.normal(k2, (c,), jnp.float32)
    mean = 0.1 * jax.random.normal(k3, (c,), jnp.float32)
    var = 1.0 + 0.1 * jax.random.uniform(k4, (c,), jnp.float32)
    scale = gamma / jnp.sqrt(var + eps)
    shift = beta - mean * scale
    return scale, shift


def init_params(key, planes, outc, ratio=4):
    C1 = planes // ratio
    C2 = C1 * 2
    inter = planes // 2
    keys = iter(jax.random.split(key, 32))

    def w(shape):
        return 0.1 * jax.random.normal(next(keys), shape, jnp.float32)

    p = {}
    p["phi_w"] = w((C2, planes))
    p["theta_w"] = w((C1, planes))
    p["adj_w"] = w((C1, C1))
    p["bn_adj_scale"], p["bn_adj_shift"] = _bn_fold(next(keys), C1)
    p["wg_w"] = w((C2, C2))
    p["bn_wg_scale"], p["bn_wg_shift"] = _bn_fold(next(keys), C2)
    p["conv3_w"] = w((planes, C2))
    p["final_w"] = w((outc, 2 * planes))
    p["local_w_raw"] = [w((planes, 3, 3)) for _ in range(3)]
    p["sg_k_w"] = w((inter, planes)); p["sg_k_b"] = w((inter,))
    p["sg_v_w"] = w((inter, planes)); p["sg_v_b"] = w((inter,))
    p["sg_q_w"] = w((inter, planes)); p["sg_q_b"] = w((inter,))
    p["sg_wg_w"] = w((inter, inter))
    p["sg_bn_scale"], p["sg_bn_shift"] = _bn_fold(next(keys), inter)
    p["sg_out_w"] = w((planes, inter))
    p["sg_out_b"] = w((planes,))
    return p


def fold_params(p, planes, ratio):
    """Fold BN scales into conv weights, reshape biases, split the final conv."""
    C1 = planes // ratio
    C2 = C1 * 2
    inter = planes // 2
    f = {}
    # depthwise taps: (planes, 3, 3) -> (9, planes, 1, 1), tap k = dy*3 + dx
    f["local_w"] = [dw.reshape(planes, 9).T.reshape(9, planes, 1, 1)
                    for dw in p["local_w_raw"]]
    # SpatialGCN (bn_wg scale folded into conv_wg weight)
    f["sg_wk"] = p["sg_k_w"]; f["sg_bk"] = p["sg_k_b"].reshape(inter, 1)
    f["sg_wv"] = p["sg_v_w"]; f["sg_bv"] = p["sg_v_b"].reshape(inter, 1)
    f["sg_wq"] = p["sg_q_w"]; f["sg_bq"] = p["sg_q_b"].reshape(inter, 1)
    f["sg_wwg"] = p["sg_bn_scale"][:, None] * p["sg_wg_w"]
    f["sg_bwg"] = p["sg_bn_shift"].reshape(inter, 1)
    f["sg_wout"] = p["sg_out_w"]; f["sg_bout"] = p["sg_out_b"].reshape(planes, 1)
    # graph branch: bn_adj folds column-wise (z_idt @ (scale*Wadj)^T), bn_wg row-wise
    f["phi_w"] = p["phi_w"]
    f["theta_w"] = p["theta_w"]
    f["adj_wT"] = (p["bn_adj_scale"][:, None] * p["adj_w"]).T        # (C1, C1)
    f["adj_b"] = p["bn_adj_shift"].reshape(1, C1)
    f["wg_w"] = p["bn_wg_scale"][:, None] * p["wg_w"]                # (C2, C2)
    f["wg_b"] = p["bn_wg_shift"].reshape(C2, 1)
    f["conv3_w"] = p["conv3_w"]
    # final 1x1 conv split so cat([spatial_local, g_out]) never materializes
    f["final_w1"] = p["final_w"][:, :planes]
    f["final_w2"] = p["final_w"][:, planes:]
    return f


def _interp_matrix(dst, src):
    """Bilinear align_corners=True interpolation matrix (dst, src)."""
    A = np.zeros((dst, src), np.float32)
    for i in range(dst):
        s = i * (src - 1) / (dst - 1) if dst > 1 else 0.0
        i0 = int(np.floor(s))
        i1 = min(i0 + 1, src - 1)
        w1 = s - i0
        A[i, i0] += 1.0 - w1
        A[i, i1] += w1
    return A


# ----------------------------------------------------------------------------
# DualGCN forward
# ----------------------------------------------------------------------------

def dual_gcn_forward(fp, feat):
    # feat: (N, planes, H, W) float32 (NCHW, same as PyTorch)
    N, C, H, W = feat.shape
    x = feat.reshape(N, C, H * W).astype(jnp.float32)

    # ---- local branch: 3 depthwise stride-2 convs (taps taken in-kernel) ----
    cur = feat.astype(jnp.float32)
    for wdw in fp["local_w"]:
        cur = depthwise_s2(cur, wdw)
    _, Cl, Hl, Wl = cur.shape
    xl = cur.reshape(N, Cl, Hl * Wl)

    # ---- fused SpatialGCN on the downsampled local features ----
    local_att = spatial_gcn(
        xl, fp["sg_wk"], fp["sg_bk"], fp["sg_wv"], fp["sg_bv"], fp["sg_wq"],
        fp["sg_bq"], fp["sg_wwg"], fp["sg_bwg"], fp["sg_wout"], fp["sg_bout"])

    # ---- fused graph branch ----
    g_out = graph_branch(x, fp["phi_w"], fp["theta_w"], fp["adj_wT"],
                         fp["adj_b"], fp["wg_w"], fp["wg_b"], fp["conv3_w"])

    # ---- fused: bilinear upsample (kron matmul) + x*local+x + split final conv ----
    A = np.kron(_interp_matrix(H, Hl), _interp_matrix(W, Wl))       # (H*W, Hl*Wl)
    At = jnp.asarray(A.T)                                           # (Hl*Wl, H*W)
    out = final_fuse(At, fp["final_w1"], fp["final_w2"], local_att, x, g_out)
    return out.reshape(N, -1, H, W)


# ----------------------------------------------------------------------------

if __name__ == "__main__":
    planes, outchannel, ratio = 8, 8, 4
    N, H, W = 2, 16, 16

    key = jax.random.PRNGKey(0)
    kp, kx = jax.random.split(key)
    params = init_params(kp, planes, outchannel, ratio)
    fparams = fold_params(params, planes, ratio)
    feat = jax.random.normal(kx, (N, planes, H, W), jnp.float32)

    out = dual_gcn_forward(fparams, feat)
    out = jax.block_until_ready(out)
    assert out.shape == (N, outchannel, H, W), out.shape
    assert bool(jnp.all(jnp.isfinite(out)))
    print("KERNEL_OK")
</pallas_src>

<mosaic_0001>
module attributes {stable_mosaic.version = 11 : i64} {
  func.func @_dw_kernel(%arg0: i32, %arg1: memref<9x8x1x1xf32, #tpu.memory_space<vmem>>, %arg2: memref<1x32x9x9xf32, #tpu.memory_space<vmem>>, %arg3: memref<1x8x8x8xf32, #tpu.memory_space<vmem>>) attributes {dimension_semantics = [#tpu.dimension_semantics<parallel>], iteration_bounds = array<i64: 2>, scalar_prefetch = 0 : i64, scratch_operands = 0 : i64, tpu.core_type = #tpu.core_type<tc>, window_params = [{pipeline_mode = #tpu.pipeline_mode<synchronous>, transform_indices = @transform_0, window_bounds = array<i64: 9, 8, 1, 1>}, {transform_indices = @transform_1, window_bounds = array<i64: 1, 32, 9, 9>}, {transform_indices = @transform_2, window_bounds = array<i64: 1, 8, 8, 8>}]} {
    %c0 = arith.constant 0 : index
    %c0_0 = arith.constant 0 : index
    %c0_1 = arith.constant 0 : index
    %c0_2 = arith.constant 0 : index
    %0 = vector.load %arg1[%c0, %c0_0, %c0_1, %c0_2] : memref<9x8x1x1xf32, #tpu.memory_space<vmem>>, vector<9x8x1x1xf32>
    %c0_3 = arith.constant 0 : index
    %c0_4 = arith.constant 0 : index
    %c0_5 = arith.constant 0 : index
    %c0_6 = arith.constant 0 : index
    %1 = vector.load %arg2[%c0_3, %c0_4, %c0_5, %c0_6] : memref<1x32x9x9xf32, #tpu.memory_space<vmem>>, vector<1x32x9x9xf32>
    %2 = vector.shape_cast %1 : vector<1x32x9x9xf32> to vector<32x9x9xf32>
    %3 = vector.extract_strided_slice %2 {offsets = [0, 0, 0], sizes = [8, 8, 8], strides = [1, 1, 1]} : vector<32x9x9xf32> to vector<8x8x8xf32>
    %4 = vector.extract_strided_slice %0 {offsets = [0, 0, 0, 0], sizes = [1, 8, 1, 1], strides = [1, 1, 1, 1]} : vector<9x8x1x1xf32> to vector<1x8x1x1xf32>
    %5 = vector.shape_cast %4 : vector<1x8x1x1xf32> to vector<8x1x1xf32>
    %6 = vector.broadcast %5 : vector<8x1x1xf32> to vector<8x8x8xf32>
    %7 = arith.mulf %3, %6 : vector<8x8x8xf32>
    %8 = vector.extract_strided_slice %2 {offsets = [8, 0, 0], sizes = [8, 8, 8], strides = [1, 1, 1]} : vector<32x9x9xf32> to vector<8x8x8xf32>
    %9 = vector.extract_strided_slice %0 {offsets = [1, 0, 0, 0], sizes = [1, 8, 1, 1], strides = [1, 1, 1, 1]} : vector<9x8x1x1xf32> to vector<1x8x1x1xf32>
    %10 = vector.shape_cast %9 : vector<1x8x1x1xf32> to vector<8x1x1xf32>
    %11 = vector.broadcast %10 : vector<8x1x1xf32> to vector<8x8x8xf32>
    %12 = arith.mulf %8, %11 : vector<8x8x8xf32>
    %13 = arith.addf %7, %12 : vector<8x8x8xf32>
    %14 = vector.extract_strided_slice %2 {offsets = [0, 0, 1], sizes = [8, 8, 8], strides = [1, 1, 1]} : vector<32x9x9xf32> to vector<8x8x8xf32>
    %15 = vector.extract_strided_slice %0 {offsets = [2, 0, 0, 0], sizes = [1, 8, 1, 1], strides = [1, 1, 1, 1]} : vector<9x8x1x1xf32> to vector<1x8x1x1xf32>
    %16 = vector.shape_cast %15 : vector<1x8x1x1xf32> to vector<8x1x1xf32>
    %17 = vector.broadcast %16 : vector<8x1x1xf32> to vector<8x8x8xf32>
    %18 = arith.mulf %14, %17 : vector<8x8x8xf32>
    %19 = arith.addf %13, %18 : vector<8x8x8xf32>
    %20 = vector.extract_strided_slice %2 {offsets = [16, 0, 0], sizes = [8, 8, 8], strides = [1, 1, 1]} : vector<32x9x9xf32> to vector<8x8x8xf32>
    %21 = vector.extract_strided_slice %0 {offsets = [3, 0, 0, 0], sizes = [1, 8, 1, 1], strides = [1, 1, 1, 1]} : vector<9x8x1x1xf32> to vector<1x8x1x1xf32>
    %22 = vector.shape_cast %21 : vector<1x8x1x1xf32> to vector<8x1x1xf32>
    %23 = vector.broadcast %22 : vector<8x1x1xf32> to vector<8x8x8xf32>
    %24 = arith.mulf %20, %23 : vector<8x8x8xf32>
    %25 = arith.addf %19, %24 : vector<8x8x8xf32>
    %26 = vector.extract_strided_slice %2 {offsets = [24, 0, 0], sizes = [8, 8, 8], strides = [1, 1, 1]} : vector<32x9x9xf32> to vector<8x8x8xf32>
    %27 = vector.extract_strided_slice %0 {offsets = [4, 0, 0, 0], sizes = [1, 8, 1, 1], strides = [1, 1, 1, 1]} : vector<9x8x1x1xf32> to vector<1x8x1x1xf32>
    %28 = vector.shape_cast %27 : vector<1x8x1x1xf32> to vector<8x1x1xf32>
    %29 = vector.broadcast %28 : vector<8x1x1xf32> to vector<8x8x8xf32>
    %30 = arith.mulf %26, %29 : vector<8x8x8xf32>
    %31 = arith.addf %25, %30 : vector<8x8x8xf32>
    %32 = vector.extract_strided_slice %2 {offsets = [16, 0, 1], sizes = [8, 8, 8], strides = [1, 1, 1]} : vector<32x9x9xf32> to vector<8x8x8xf32>
    %33 = vector.extract_strided_slice %0 {offsets = [5, 0, 0, 0], sizes = [1, 8, 1, 1], strides = [1, 1, 1, 1]} : vector<9x8x1x1xf32> to vector<1x8x1x1xf32>
    %34 = vector.shape_cast %33 : vector<1x8x1x1xf32> to vector<8x1x1xf32>
    %35 = vector.broadcast %34 : vector<8x1x1xf32> to vector<8x8x8xf32>
    %36 = arith.mulf %32, %35 : vector<8x8x8xf32>
    %37 = arith.addf %31, %36 : vector<8x8x8xf32>
    %38 = vector.extract_strided_slice %2 {offsets = [0, 1, 0], sizes = [8, 8, 8], strides = [1, 1, 1]} : vector<32x9x9xf32> to vector<8x8x8xf32>
    %39 = vector.extract_strided_slice %0 {offsets = [6, 0, 0, 0], sizes = [1, 8, 1, 1], strides = [1, 1, 1, 1]} : vector<9x8x1x1xf32> to vector<1x8x1x1xf32>
    %40 = vector.shape_cast %39 : vector<1x8x1x1xf32> to vector<8x1x1xf32>
    %41 = vector.broadcast %40 : vector<8x1x1xf32> to vector<8x8x8xf32>
    %42 = arith.mulf %38, %41 : vector<8x8x8xf32>
    %43 = arith.addf %37, %42 : vector<8x8x8xf32>
    %44 = vector.extract_strided_slice %2 {offsets = [8, 1, 0], sizes = [8, 8, 8], strides = [1, 1, 1]} : vector<32x9x9xf32> to vector<8x8x8xf32>
    %45 = vector.extract_strided_slice %0 {offsets = [7, 0, 0, 0], sizes = [1, 8, 1, 1], strides = [1, 1, 1, 1]} : vector<9x8x1x1xf32> to vector<1x8x1x1xf32>
    %46 = vector.shape_cast %45 : vector<1x8x1x1xf32> to vector<8x1x1xf32>
    %47 = vector.broadcast %46 : vector<8x1x1xf32> to vector<8x8x8xf32>
    %48 = arith.mulf %44, %47 : vector<8x8x8xf32>
    %49 = arith.addf %43, %48 : vector<8x8x8xf32>
    %50 = vector.extract_strided_slice %2 {offsets = [0, 1, 1], sizes = [8, 8, 8], strides = [1, 1, 1]} : vector<32x9x9xf32> to vector<8x8x8xf32>
    %51 = vector.extract_strided_slice %0 {offsets = [8, 0, 0, 0], sizes = [1, 8, 1, 1], strides = [1, 1, 1, 1]} : vector<9x8x1x1xf32> to vector<1x8x1x1xf32>
    %52 = vector.shape_cast %51 : vector<1x8x1x1xf32> to vector<8x1x1xf32>
    %53 = vector.broadcast %52 : vector<8x1x1xf32> to vector<8x8x8xf32>
    %54 = arith.mulf %50, %53 : vector<8x8x8xf32>
    %55 = arith.addf %49, %54 : vector<8x8x8xf32>
    %c0_7 = arith.constant 0 : index
    %c0_8 = arith.constant 0 : index
    %c0_9 = arith.constant 0 : index
    %c0_10 = arith.constant 0 : index
    %56 = vector.load %arg3[%c0_7, %c0_8, %c0_9, %c0_10] : memref<1x8x8x8xf32, #tpu.memory_space<vmem>>, vector<1x8x8x8xf32>
    %57 = vector.shape_cast %56 : vector<1x8x8x8xf32> to vector<8x8x8xf32>
    %58 = vector.shape_cast %55 : vector<8x8x8xf32> to vector<1x8x8x8xf32>
    tpu.vector_store %arg3[%c0_7, %c0_8, %c0_9, %c0_10], %58 {strides = array<i32>} : memref<1x8x8x8xf32, #tpu.memory_space<vmem>>, vector<1x8x8x8xf32>,
    return
  }
  func.func @transform_0(%arg0: i32) -> (i32, i32, i32, i32) {
    %c0_i32 = arith.constant 0 : i32
    %c0_i32_0 = arith.constant 0 : i32
    %c0_i32_1 = arith.constant 0 : i32
    %c0_i32_2 = arith.constant 0 : i32
    %c0_i32_3 = arith.constant 0 : i32
    return %c0_i32, %c0_i32_0, %c0_i32_1, %c0_i32_2 : i32, i32, i32, i32
  }
  func.func @transform_1(%arg0: i32) -> (i32, i32, i32, i32) {
    %c0_i32 = arith.constant 0 : i32
    %c0_i32_0 = arith.constant 0 : i32
    %c0_i32_1 = arith.constant 0 : i32
    %c0_i32_2 = arith.constant 0 : i32
    return %arg0, %c0_i32, %c0_i32_0, %c0_i32_1 : i32, i32, i32, i32
  }
  func.func @transform_2(%arg0: i32) -> (i32, i32, i32, i32) {
    %c0_i32 = arith.constant 0 : i32
    %c0_i32_0 = arith.constant 0 : i32
    %c0_i32_1 = arith.constant 0 : i32
    %c0_i32_2 = arith.constant 0 : i32
    return %arg0, %c0_i32, %c0_i32_0, %c0_i32_1 : i32, i32, i32, i32
  }
}

</mosaic_0001>

<llo_original>
// kernel: tpu_custom_call.1
$region0: #{tpu_custom_call.1}
  #allocation0 [shape = 'u32[]', space=smem, size = 0x4, offset = 0x4, fixed_abs, tag = 'smem constant byte address 0x4 - core index']
  #allocation1 [shape = 'u32[72,128]{1,0:T(1,128)}', space=vmem, size = 0x9000, scoped, tag = 'internal scratch']
  %s0 = inlined_call_operand.vmem [shape: f32[9,8,1,1], index: 0, kind: input, shape index: {}]
  %s1 = inlined_call_operand.vmem [shape: f32[2,32,9,9], index: 1, kind: input, shape index: {}]
  %s2 = inlined_call_operand.hbm [shape: f32[2,8,8,8], index: 2, kind: output, shape index: {}]
  %s3 = sld [smem:[#allocation0]]
  $region41: #{tpu_custom_call.1} parent=0
    _
  %s5 = ssub.s32 1, %s3
  %s6 = scalar_select 0, %s5, %s3
  $region1: #{tpu_custom_call.1} parent=0
    #allocation2 [shape = 'u8[65536]{0}', space=vmem, size = 0x10000, scoped, tag = 'output window, operand 0']
    #allocation3 [shape = 's32[2]{0}', space=sflag, size = 0x8, scoped, tag = 'scoped memory for tpu_custom_call.1']
    %7 = vsyncpa [#allocation3], 0
    %s8 = scalar_lea.sflag [#allocation3], 1
    %9 = vsyncpa %s8, 0
    loop: start=0, step=1, limit=4
    $region2: #{tpu_custom_call.1} parent=1 // loop_pre_header
      _
    $region3: #{tpu_custom_call.1} parent=1 // loop_header
      %s11 = sphi 0, %s15
      %p12 = scmp.ge.s32.totalorder %s11, 4
      %s19 = sphi 0, %s19
      %s21 = sphi 0, %s19
      %s22 = sphi 0, %s21
      %s36 = sphi 0, %s22
      %s42 = sphi 0, %s44
      %s45 = sphi 0, %s42
      %s46 = sphi 0, %s45
      %s62 = sphi 0, %s46
      %s68 = sphi 0, %s70
      %s71 = sphi 0, %s68
      %s72 = sphi 0, %s71
      %s88 = sphi 0, %s72
    $region4: #{tpu_custom_call.1} parent=1 // loop_header_branch
      %14 = sbr.rel (%p12) target = $region8
    $region5: #{tpu_custom_call.1} parent=1 // loop_body
      %s16 = ssub.s32 %s11, 1
      %s17 = ssub.s32 %s11, 2
      %s18 = sadd.s32 %s11, 1
      %s20 = sadd.s32 %s19, 1
      %p23 = scmp.eq.s32.totalorder %s11, 1
      %p24 = scmp.ne.s32.totalorder %s19, %s21
      %p25 = scmp.eq.s32.totalorder %s11, 0
      %p26 = por %p24, %p25
      %p27 = scmp.ne.s32.totalorder %s19, %s21
      %p28 = scmp.eq.s32.totalorder %s16, 1
      %p29 = por %p27, %p28
      %p30 = scmp.ne.s32.totalorder %s21, %s22
      %p31 = scmp.eq.s32.totalorder %s16, 0
      %p32 = por %p30, %p31
      %p33 = scmp.ne.s32.totalorder %s21, %s22
      %p34 = scmp.eq.s32.totalorder %s17, 1
      %p35 = por %p33, %p34
      %p37 = scmp.ne.s32.totalorder %s22, %s36
      %p38 = scmp.eq.s32.totalorder %s17, 0
      %p39 = por %p37, %p38
      %s40 = ssub.s32 %s11, %s18
      %p41 = scmp.eq.s32.totalorder %s40, 0
      %s43 = sadd.s32 %s42, 1
      %s44 = scalar_select %p41, %s42, %s43
      %p47 = pneg %p41
      %p48 = scmp.eq.s32.totalorder %s11, 1
      %p49 = por %p47, %p48
      %p50 = scmp.ne.s32.totalorder %s42, %s45
      %p51 = scmp.eq.s32.totalorder %s11, 0
      %p52 = por %p50, %p51
      %p53 = scmp.ne.s32.totalorder %s42, %s45
      %p54 = scmp.eq.s32.totalorder %s16, 1
      %p55 = por %p53, %p54
      %p56 = scmp.ne.s32.totalorder %s45, %s46
      %p57 = scmp.eq.s32.totalorder %s16, 0
      %p58 = por %p56, %p57
      %p59 = scmp.ne.s32.totalorder %s45, %s46
      %p60 = scmp.eq.s32.totalorder %s17, 1
      %p61 = por %p59, %p60
      %p63 = scmp.ne.s32.totalorder %s46, %s62
      %p64 = scmp.eq.s32.totalorder %s17, 0
      %p65 = por %p63, %p64
      %s66 = ssub.s32 %s11, %s18
      %p67 = scmp.eq.s32.totalorder %s66, 0
      %s69 = sadd.s32 %s68, 1
      %s70 = scalar_select %p67, %s68, %s69
      %p73 = pneg %p67
      %p74 = scmp.eq.s32.totalorder %s11, 1
      %p75 = por %p73, %p74
      %p76 = scmp.ne.s32.totalorder %s68, %s71
      %p77 = scmp.eq.s32.totalorder %s11, 0
      %p78 = por %p76, %p77
      %p79 = scmp.ne.s32.totalorder %s68, %s71
      %p80 = scmp.eq.s32.totalorder %s16, 1
      %p81 = por %p79, %p80
      %p82 = scmp.ne.s32.totalorder %s71, %s72
      %p83 = scmp.eq.s32.totalorder %s16, 0
      %p84 = por %p82, %p83
      %p85 = scmp.ne.s32.totalorder %s71, %s72
      %p86 = scmp.eq.s32.totalorder %s17, 1
      %p87 = por %p85, %p86
      %p89 = scmp.ne.s32.totalorder %s72, %s88
      %p90 = scmp.eq.s32.totalorder %s17, 0
      %p91 = por %p89, %p90
      %p92 = scmp.le.s32.totalorder 1, %s11
      %p93 = scmp.lt.s32.totalorder %s11, 3
      %p94 = pnand %p92, %p93
      %p95 = pneg %p94
      // Predicated region
      $region9: #{tpu_custom_call.1} parent=5 // pred_check
        _
      $region10: #{tpu_custom_call.1} parent=5 // pred_check_branch
        %97 = sbr.rel (%p94) target = $region12
      $region11: #{tpu_custom_call.1} parent=5 // pred_region
        %s98 = ssub.s32 %s11, 1
        // Predicated region
        $region13: #{tpu_custom_call.1} parent=11 // pred_check
          %p99 = pneg %p32
        $region14: #{tpu_custom_call.1} parent=11 // pred_check_branch
          %101 = sbr.rel (%p99) target = $region16
        $region15: #{tpu_custom_call.1} parent=11 // pred_region
          _
        $region16: #{tpu_custom_call.1} parent=11 // pred_fallthru
          _
      $region12: #{tpu_custom_call.1} parent=5 // pred_fallthru
        _
      %p102 = scmp.lt.s32.totalorder %s11, 2
      // Predicated region
      $region17: #{tpu_custom_call.1} parent=5 // pred_check
        %p103 = pneg %p102
      $region18: #{tpu_custom_call.1} parent=5 // pred_check_branch
        %105 = sbr.rel (%p103) target = $region20
      $region19: #{tpu_custom_call.1} parent=5 // pred_region
        // Predicated region
        $region21: #{tpu_custom_call.1} parent=19 // pred_check
          %p106 = pneg %p52
        $region22: #{tpu_custom_call.1} parent=19 // pred_check_branch
          %108 = sbr.rel (%p106) target = $region24
        $region23: #{tpu_custom_call.1} parent=19 // pred_region
          %p109 = scmp.lt.s32.totalorder %s11, 1
          %s110 = scalar_select %p109, %s11, 1
          %s111 = smul.addr %s110, 64
          %s112 = smul.addr %s111, 8
          %s113 = scalar_lea.vmem %s1, %s112
        $region24: #{tpu_custom_call.1} parent=19 // pred_fallthru
          _
      $region20: #{tpu_custom_call.1} parent=5 // pred_fallthru
        _
      %p114 = scmp.le.s32.totalorder 1, %s11
      %p115 = scmp.lt.s32.totalorder %s11, 3
      %p116 = pnand %p114, %p115
      %p117 = pneg %p116
      // Predicated region
      $region25: #{tpu_custom_call.1} parent=5 // pred_check
        _
      $region26: #{tpu_custom_call.1} parent=5 // pred_check_branch
        %119 = sbr.rel (%p116) target = $region28
      $region27: #{tpu_custom_call.1} parent=5 // pred_region
        %s120 = ssub.s32 %s11, 1
        %p121 = pneg %p32
        %p122 = pneg %p29
        %p123 = scmp.lt.s32.totalorder %s16, 1
        %s124 = scalar_select %p123, %s16, 1
        %s125 = smul.addr %s124, 64
        %s126 = smul.addr %s125, 8
        %s127 = scalar_lea.vmem %s1, %s126
        %p128 = pneg %p58
        %p129 = pneg %p55
        %p130 = pneg %p84
        %p131 = pneg %p81
        %s132 = sand.u32 %s71, 1
        %s133 = scalar_lea.sflag [#allocation3], %s132
        %s134 = sand.u32 %s71, 1
        %s135 = smul.addr %s134, 64
        %s136 = scalar_lea.vmem [#allocation2], %s135
        %p137 = scmp.lt.s32.totalorder %s16, 1
        %s138 = scalar_select %p137, %s16, 1
        %s139 = smul.addr %s138, 64
        %s140 = smul.addr %s139, 8
        %s141 = scalar_lea.vmem %s1, %s140
        %v142 = vld [vmem:[%s0] sm:$0x1]
        %v143 = vld [vmem:[%s0 + $0x1] sm:$0x1]
        %v144 = vld [vmem:[%s0 + $0x2] sm:$0x1]
        %v145 = vld [vmem:[%s0 + $0x3] sm:$0x1]
        %v146 = vld [vmem:[%s0 + $0x4] sm:$0x1]
        %v147 = vld [vmem:[%s0 + $0x5] sm:$0x1]
        %v148 = vld [vmem:[%s0 + $0x6] sm:$0x1]
        %v149 = vld [vmem:[%s0 + $0x7] sm:$0x1]
        %v150 = vld [vmem:[%s0 + $0x8] sm:$0x1]
        %v151 = vld [vmem:[%s0 + $0x9] sm:$0x1]
        %v152 = vld [vmem:[%s0 + $0xa] sm:$0x1]
        %v153 = vld [vmem:[%s0 + $0xb] sm:$0x1]
        %v154 = vld [vmem:[%s0 + $0xc] sm:$0x1]
        %v155 = vld [vmem:[%s0 + $0xd] sm:$0x1]
        %v156 = vld [vmem:[%s0 + $0xe] sm:$0x1]
        %v157 = vld [vmem:[%s0 + $0xf] sm:$0x1]
        %v158 = vld [vmem:[%s0 + $0x10] sm:$0x1]
        %v159 = vld [vmem:[%s0 + $0x11] sm:$0x1]
        %v160 = vld [vmem:[%s0 + $0x12] sm:$0x1]
        %v161 = vld [vmem:[%s0 + $0x13] sm:$0x1]
        %v162 = vld [vmem:[%s0 + $0x14] sm:$0x1]
        %v163 = vld [vmem:[%s0 + $0x15] sm:$0x1]
        %v164 = vld [vmem:[%s0 + $0x16] sm:$0x1]
        %v165 = vld [vmem:[%s0 + $0x17] sm:$0x1]
        %v166 = vld [vmem:[%s0 + $0x18] sm:$0x1]
        %v167 = vld [vmem:[%s0 + $0x19] sm:$0x1]
        %v168 = vld [vmem:[%s0 + $0x1a] sm:$0x1]
        %v169 = vld [vmem:[%s0 + $0x1b] sm:$0x1]
        %v170 = vld [vmem:[%s0 + $0x1c] sm:$0x1]
        %v171 = vld [vmem:[%s0 + $0x1d] sm:$0x1]
        %v172 = vld [vmem:[%s0 + $0x1e] sm:$0x1]
        %v173 = vld [vmem:[%s0 + $0x1f] sm:$0x1]
        %v174 = vld [vmem:[%s0 + $0x20] sm:$0x1]
        %v175 = vld [vmem:[%s0 + $0x21] sm:$0x1]
        %v176 = vld [vmem:[%s0 + $0x22] sm:$0x1]
        %v177 = vld [vmem:[%s0 + $0x23] sm:$0x1]
        %v178 = vld [vmem:[%s0 + $0x24] sm:$0x1]
        %v179 = vld [vmem:[%s0 + $0x25] sm:$0x1]
        %v180 = vld [vmem:[%s0 + $0x26] sm:$0x1]
        %v181 = vld [vmem:[%s0 + $0x27] sm:$0x1]
        %v182 = vld [vmem:[%s0 + $0x28] sm:$0x1]
        %v183 = vld [vmem:[%s0 + $0x29] sm:$0x1]
        %v184 = vld [vmem:[%s0 + $0x2a] sm:$0x1]
        %v185 = vld [vmem:[%s0 + $0x2b] sm:$0x1]
        %v186 = vld [vmem:[%s0 + $0x2c] sm:$0x1]
        %v187 = vld [vmem:[%s0 + $0x2d] sm:$0x1]
        %v188 = vld [vmem:[%s0 + $0x2e] sm:$0x1]
        %v189 = vld [vmem:[%s0 + $0x2f] sm:$0x1]
        %v190 = vld [vmem:[%s0 + $0x30] sm:$0x1]
        %v191 = vld [vmem:[%s0 + $0x31] sm:$0x1]
        %v192 = vld [vmem:[%s0 + $0x32] sm:$0x1]
        %v193 = vld [vmem:[%s0 + $0x33] sm:$0x1]
        %v194 = vld [vmem:[%s0 + $0x34] sm:$0x1]
        %v195 = vld [vmem:[%s0 + $0x35] sm:$0x1]
        %v196 = vld [vmem:[%s0 + $0x36] sm:$0x1]
        %v197 = vld [vmem:[%s0 + $0x37] sm:$0x1]
        %v198 = vld [vmem:[%s0 + $0x38] sm:$0x1]
        %v199 = vld [vmem:[%s0 + $0x39] sm:$0x1]
        %v200 = vld [vmem:[%s0 + $0x3a] sm:$0x1]
        %v201 = vld [vmem:[%s0 + $0x3b] sm:$0x1]
        %v202 = vld [vmem:[%s0 + $0x3c] sm:$0x1]
        %v203 = vld [vmem:[%s0 + $0x3d] sm:$0x1]
        %v204 = vld [vmem:[%s0 + $0x3e] sm:$0x1]
        %v205 = vld [vmem:[%s0 + $0x3f] sm:$0x1]
        %v206 = vld [vmem:[%s0 + $0x40] sm:$0x1]
        %v207 = vld [vmem:[%s0 + $0x41] sm:$0x1]
        %v208 = vld [vmem:[%s0 + $0x42] sm:$0x1]
        %v209 = vld [vmem:[%s0 + $0x43] sm:$0x1]
        %v210 = vld [vmem:[%s0 + $0x44] sm:$0x1]
        %v211 = vld [vmem:[%s0 + $0x45] sm:$0x1]
        %v212 = vld [vmem:[%s0 + $0x46] sm:$0x1]
        %v213 = vld [vmem:[%s0 + $0x47] sm:$0x1]
        %v214 = vld [vmem:[%s141] sm:$0xff]
        %v215 = vld [vmem:[%s141 + $0x8] sm:$0x1]
        %v216 = vld [vmem:[%s141 + $0x10] sm:$0xff]
        %v217 = vld [vmem:[%s141 + $0x18] sm:$0x1]
        %v218 = vld [vmem:[%s141 + $0x20] sm:$0xff]
        %v219 = vld [vmem:[%s141 + $0x28] sm:$0x1]
        %v220 = vld [vmem:[%s141 + $0x30] sm:$0xff]
        %v221 = vld [vmem:[%s141 + $0x38] sm:$0x1]
        %v222 = vld [vmem:[%s141 + $0x40] sm:$0xff]
        %v223 = vld [vmem:[%s141 + $0x48] sm:$0x1]
        %v224 = vld [vmem:[%s141 + $0x50] sm:$0xff]
        %v225 = vld [vmem:[%s141 + $0x58] sm:$0x1]
        %v226 = vld [vmem:[%s141 + $0x60] sm:$0xff]
        %v227 = vld [vmem:[%s141 + $0x68] sm:$0x1]
        %v228 = vld [vmem:[%s141 + $0x70] sm:$0xff]
        %v229 = vld [vmem:[%s141 + $0x78] sm:$0x1]
        %v230 = vld [vmem:[%s141 + $0x80] sm:$0xff]
        %v231 = vld [vmem:[%s141 + $0x88] sm:$0x1]
        %v232 = vld [vmem:[%s141 + $0x90] sm:$0xff]
        %v233 = vld [vmem:[%s141 + $0x98] sm:$0x1]
        %v234 = vld [vmem:[%s141 + $0xa0] sm:$0xff]
        %v235 = vld [vmem:[%s141 + $0xa8] sm:$0x1]
        %v236 = vld [vmem:[%s141 + $0xb0] sm:$0xff]
        %v237 = vld [vmem:[%s141 + $0xb8] sm:$0x1]
        %v238 = vld [vmem:[%s141 + $0xc0] sm:$0xff]
        %v239 = vld [vmem:[%s141 + $0xc8] sm:$0x1]
        %v240 = vld [vmem:[%s141 + $0xd0] sm:$0xff]
        %v241 = vld [vmem:[%s141 + $0xd8] sm:$0x1]
        %v242 = vld [vmem:[%s141 + $0xe0] sm:$0xff]
        %v243 = vld [vmem:[%s141 + $0xe8] sm:$0x1]
        %v244 = vld [vmem:[%s141 + $0xf0] sm:$0xff]
        %v245 = vld [vmem:[%s141 + $0xf8] sm:$0x1]
        %v246 = vld [vmem:[%s141 + $0x100] sm:$0xff]
        %v247 = vld [vmem:[%s141 + $0x110] sm:$0xff]
        %v248 = vld [vmem:[%s141 + $0x120] sm:$0xff]
        %v249 = vld [vmem:[%s141 + $0x130] sm:$0xff]
        %v250 = vld [vmem:[%s141 + $0x140] sm:$0xff]
        %v251 = vld [vmem:[%s141 + $0x150] sm:$0xff]
        %v252 = vld [vmem:[%s141 + $0x160] sm:$0xff]
        %v253 = vld [vmem:[%s141 + $0x170] sm:$0xff]
        %v254 = vld [vmem:[%s141 + $0x180] sm:$0xff]
        %v255 = vld [vmem:[%s141 + $0x190] sm:$0xff]
        %v256 = vld [vmem:[%s141 + $0x1a0] sm:$0xff]
        %v257 = vld [vmem:[%s141 + $0x1b0] sm:$0xff]
        %v258 = vld [vmem:[%s141 + $0x1c0] sm:$0xff]
        %v259 = vld [vmem:[%s141 + $0x1d0] sm:$0xff]
        %v260 = vld [vmem:[%s141 + $0x1e0] sm:$0xff]
        %v261 = vld [vmem:[%s141 + $0x1f0] sm:$0xff]
        %v270 = vperm.slane %v142, 0
        %v271 = vperm.slane %v143, 0
        %v272 = vperm.slane %v144, 0
        %v273 = vperm.slane %v145, 0
        %v274 = vperm.slane %v146, 0
        %v275 = vperm.slane %v147, 0
        %v276 = vperm.slane %v148, 0
        %v277 = vperm.slane %v149, 0
        %278 = vset.pattern.permute.xlu0 0
        %279 = vperm.xlu0 %278, %v270
        %v280 = vpop.permute.xlu0 %279
        %282 = vset.pattern.permute.xlu0 0
        %283 = vperm.xlu0 %282, %v271
        %v284 = vpop.permute.xlu0 %283
        %286 = vset.pattern.permute.xlu0 0
        %287 = vperm.xlu0 %286, %v272
        %v288 = vpop.permute.xlu0 %287
        %290 = vset.pattern.permute.xlu0 0
        %291 = vperm.xlu0 %290, %v273
        %v292 = vpop.permute.xlu0 %291
        %294 = vset.pattern.permute.xlu0 0
        %295 = vperm.xlu0 %294, %v274
        %v296 = vpop.permute.xlu0 %295
        %298 = vset.pattern.permute.xlu0 0
        %299 = vperm.xlu0 %298, %v275
        %v300 = vpop.permute.xlu0 %299
        %302 = vset.pattern.permute.xlu0 0
        %303 = vperm.xlu0 %302, %v276
        %v304 = vpop.permute.xlu0 %303
        %306 = vset.pattern.permute.xlu0 0
        %307 = vperm.xlu0 %306, %v277
        %v308 = vpop.permute.xlu0 %307
        %v310 = vmul.f32 %v214, %v280
        %v311 = vmul.f32 %v216, %v284
        %v312 = vmul.f32 %v218, %v288
        %v313 = vmul.f32 %v220, %v292
        %v314 = vmul.f32 %v222, %v296
        %v315 = vmul.f32 %v224, %v300
        %v316 = vmul.f32 %v226, %v304
        %v317 = vmul.f32 %v228, %v308
        %v326 = vperm.slane %v150, 0
        %v327 = vperm.slane %v151, 0
        %v328 = vperm.slane %v152, 0
        %v329 = vperm.slane %v153, 0
        %v330 = vperm.slane %v154, 0
        %v331 = vperm.slane %v155, 0
        %v332 = vperm.slane %v156, 0
        %v333 = vperm.slane %v157, 0
        %334 = vset.pattern.permute.xlu0 0
        %335 = vperm.xlu0 %334, %v326
        %v336 = vpop.permute.xlu0 %335
        %338 = vset.pattern.permute.xlu0 0
        %339 = vperm.xlu0 %338, %v327
        %v340 = vpop.permute.xlu0 %339
        %342 = vset.pattern.permute.xlu0 0
        %343 = vperm.xlu0 %342, %v328
        %v344 = vpop.permute.xlu0 %343
        %346 = vset.pattern.permute.xlu0 0
        %347 = vperm.xlu0 %346, %v329
        %v348 = vpop.permute.xlu0 %347
        %350 = vset.pattern.permute.xlu0 0
        %351 = vperm.xlu0 %350, %v330
        %v352 = vpop.permute.xlu0 %351
        %354 = vset.pattern.permute.xlu0 0
        %355 = vperm.xlu0 %354, %v331
        %v356 = vpop.permute.xlu0 %355
        %358 = vset.pattern.permute.xlu0 0
        %359 = vperm.xlu0 %358, %v332
        %v360 = vpop.permute.xlu0 %359
        %362 = vset.pattern.permute.xlu0 0
        %363 = vperm.xlu0 %362, %v333
        %v364 = vpop.permute.xlu0 %363
        %v366 = vmul.f32 %v230, %v336
        %v367 = vmul.f32 %v232, %v340
        %v368 = vmul.f32 %v234, %v344
        %v369 = vmul.f32 %v236, %v348
        %v370 = vmul.f32 %v238, %v352
        %v371 = vmul.f32 %v240, %v356
        %v372 = vmul.f32 %v242, %v360
        %v373 = vmul.f32 %v244, %v364
        %v374 = vadd.f32 %v310, %v366
        %v375 = vadd.f32 %v311, %v367
        %v376 = vadd.f32 %v312, %v368
        %v377 = vadd.f32 %v313, %v369
        %v378 = vadd.f32 %v314, %v370
        %v379 = vadd.f32 %v315, %v371
        %v380 = vadd.f32 %v316, %v372
        %v381 = vadd.f32 %v317, %v373
        %v390 = vperm.slane %v158, 0
        %v391 = vperm.slane %v159, 0
        %v392 = vperm.slane %v160, 0
        %v393 = vperm.slane %v161, 0
        %v394 = vperm.slane %v162, 0
        %v395 = vperm.slane %v163, 0
        %v396 = vperm.slane %v164, 0
        %v397 = vperm.slane %v165, 0
        %398 = vset.pattern.permute.xlu0 0
        %399 = vperm.xlu0 %398, %v390
        %v400 = vpop.permute.xlu0 %399
        %402 = vset.pattern.permute.xlu0 0
        %403 = vperm.xlu0 %402, %v391
        %v404 = vpop.permute.xlu0 %403
        %406 = vset.pattern.permute.xlu0 0
        %407 = vperm.xlu0 %406, %v392
        %v408 = vpop.permute.xlu0 %407
        %410 = vset.pattern.permute.xlu0 0
        %411 = vperm.xlu0 %410, %v393
        %v412 = vpop.permute.xlu0 %411
        %414 = vset.pattern.permute.xlu0 0
        %415 = vperm.xlu0 %414, %v394
        %v416 = vpop.permute.xlu0 %415
        %418 = vset.pattern.permute.xlu0 0
        %419 = vperm.xlu0 %418, %v395
        %v420 = vpop.permute.xlu0 %419
        %422 = vset.pattern.permute.xlu0 0
        %423 = vperm.xlu0 %422, %v396
        %v424 = vpop.permute.xlu0 %423
        %426 = vset.pattern.permute.xlu0 0
        %427 = vperm.xlu0 %426, %v397
        %v428 = vpop.permute.xlu0 %427
        %v430 = vmul.f32 %v214, %v400
        %v431 = vmul.f32 %v216, %v404
        %v432 = vmul.f32 %v218, %v408
        %v433 = vmul.f32 %v220, %v412
        %v434 = vmul.f32 %v222, %v416
        %v435 = vmul.f32 %v224, %v420
        %v436 = vmul.f32 %v226, %v424
        %v437 = vmul.f32 %v228, %v428
        %446 = vrot.lane.b32.xlu0 %v430, 127
        %v447 = vpop.permute.xlu0 %446
        %448 = vrot.lane.b32.xlu0 %v431, 127
        %v449 = vpop.permute.xlu0 %448
        %450 = vrot.lane.b32.xlu0 %v432, 127
        %v451 = vpop.permute.xlu0 %450
        %452 = vrot.lane.b32.xlu0 %v433, 127
        %v453 = vpop.permute.xlu0 %452
        %454 = vrot.lane.b32.xlu0 %v434, 127
        %v455 = vpop.permute.xlu0 %454
        %456 = vrot.lane.b32.xlu0 %v435, 127
        %v457 = vpop.permute.xlu0 %456
        %458 = vrot.lane.b32.xlu0 %v436, 127
        %v459 = vpop.permute.xlu0 %458
        %460 = vrot.lane.b32.xlu0 %v437, 127
        %v461 = vpop.permute.xlu0 %460
        %v470 = vadd.f32 %v374, %v447
        %v471 = vadd.f32 %v375, %v449
        %v472 = vadd.f32 %v376, %v451
        %v473 = vadd.f32 %v377, %v453
        %v474 = vadd.f32 %v378, %v455
        %v475 = vadd.f32 %v379, %v457
        %v476 = vadd.f32 %v380, %v459
        %v477 = vadd.f32 %v381, %v461
        %v486 = vperm.slane %v166, 0
        %v487 = vperm.slane %v167, 0
        %v488 = vperm.slane %v168, 0
        %v489 = vperm.slane %v169, 0
        %v490 = vperm.slane %v170, 0
        %v491 = vperm.slane %v171, 0
        %v492 = vperm.slane %v172, 0
        %v493 = vperm.slane %v173, 0
        %494 = vset.pattern.permute.xlu0 0
        %495 = vperm.xlu0 %494, %v486
        %v496 = vpop.permute.xlu0 %495
        %498 = vset.pattern.permute.xlu0 0
        %499 = vperm.xlu0 %498, %v487
        %v500 = vpop.permute.xlu0 %499
        %502 = vset.pattern.permute.xlu0 0
        %503 = vperm.xlu0 %502, %v488
        %v504 = vpop.permute.xlu0 %503
        %506 = vset.pattern.permute.xlu0 0
        %507 = vperm.xlu0 %506, %v489
        %v508 = vpop.permute.xlu0 %507
        %510 = vset.pattern.permute.xlu0 0
        %511 = vperm.xlu0 %510, %v490
        %v512 = vpop.permute.xlu0 %511
        %514 = vset.pattern.permute.xlu0 0
        %515 = vperm.xlu0 %514, %v491
        %v516 = vpop.permute.xlu0 %515
        %518 = vset.pattern.permute.xlu0 0
        %519 = vperm.xlu0 %518, %v492
        %v520 = vpop.permute.xlu0 %519
        %522 = vset.pattern.permute.xlu0 0
        %523 = vperm.xlu0 %522, %v493
        %v524 = vpop.permute.xlu0 %523
        %v526 = vmul.f32 %v246, %v496
        %v527 = vmul.f32 %v247, %v500
        %v528 = vmul.f32 %v248, %v504
        %v529 = vmul.f32 %v249, %v508
        %v530 = vmul.f32 %v250, %v512
        %v531 = vmul.f32 %v251, %v516
        %v532 = vmul.f32 %v252, %v520
        %v533 = vmul.f32 %v253, %v524
        %v534 = vadd.f32 %v470, %v526
        %v535 = vadd.f32 %v471, %v527
        %v536 = vadd.f32 %v472, %v528
        %v537 = vadd.f32 %v473, %v529
        %v538 = vadd.f32 %v474, %v530
        %v539 = vadd.f32 %v475, %v531
        %v540 = vadd.f32 %v476, %v532
        %v541 = vadd.f32 %v477, %v533
        %v550 = vperm.slane %v174, 0
        %v551 = vperm.slane %v175, 0
        %v552 = vperm.slane %v176, 0
        %v553 = vperm.slane %v177, 0
        %v554 = vperm.slane %v178, 0
        %v555 = vperm.slane %v179, 0
        %v556 = vperm.slane %v180, 0
        %v557 = vperm.slane %v181, 0
        %558 = vset.pattern.permute.xlu0 0
        %559 = vperm.xlu0 %558, %v550
        %v560 = vpop.permute.xlu0 %559
        %562 = vset.pattern.permute.xlu0 0
        %563 = vperm.xlu0 %562, %v551
        %v564 = vpop.permute.xlu0 %563
        %566 = vset.pattern.permute.xlu0 0
        %567 = vperm.xlu0 %566, %v552
        %v568 = vpop.permute.xlu0 %567
        %570 = vset.pattern.permute.xlu0 0
        %571 = vperm.xlu0 %570, %v553
        %v572 = vpop.permute.xlu0 %571
        %574 = vset.pattern.permute.xlu0 0
        %575 = vperm.xlu0 %574, %v554
        %v576 = vpop.permute.xlu0 %575
        %578 = vset.pattern.permute.xlu0 0
        %579 = vperm.xlu0 %578, %v555
        %v580 = vpop.permute.xlu0 %579
        %582 = vset.pattern.permute.xlu0 0
        %583 = vperm.xlu0 %582, %v556
        %v584 = vpop.permute.xlu0 %583
        %586 = vset.pattern.permute.xlu0 0
        %587 = vperm.xlu0 %586, %v557
        %v588 = vpop.permute.xlu0 %587
        %v590 = vmul.f32 %v254, %v560
        %v591 = vmul.f32 %v255, %v564
        %v592 = vmul.f32 %v256, %v568
        %v593 = vmul.f32 %v257, %v572
        %v594 = vmul.f32 %v258, %v576
        %v595 = vmul.f32 %v259, %v580
        %v596 = vmul.f32 %v260, %v584
        %v597 = vmul.f32 %v261, %v588
        %v598 = vadd.f32 %v534, %v590
        %v599 = vadd.f32 %v535, %v591
        %v600 = vadd.f32 %v536, %v592
        %v601 = vadd.f32 %v537, %v593
        %v602 = vadd.f32 %v538, %v594
        %v603 = vadd.f32 %v539, %v595
        %v604 = vadd.f32 %v540, %v596
        %v605 = vadd.f32 %v541, %v597
        %v614 = vperm.slane %v182, 0
        %v615 = vperm.slane %v183, 0
        %v616 = vperm.slane %v184, 0
        %v617 = vperm.slane %v185, 0
        %v618 = vperm.slane %v186, 0
        %v619 = vperm.slane %v187, 0
        %v620 = vperm.slane %v188, 0
        %v621 = vperm.slane %v189, 0
        %622 = vset.pattern.permute.xlu0 0
        %623 = vperm.xlu0 %622, %v614
        %v624 = vpop.permute.xlu0 %623
        %626 = vset.pattern.permute.xlu0 0
        %627 = vperm.xlu0 %626, %v615
        %v628 = vpop.permute.xlu0 %627
        %630 = vset.pattern.permute.xlu0 0
        %631 = vperm.xlu0 %630, %v616
        %v632 = vpop.permute.xlu0 %631
        %634 = vset.pattern.permute.xlu0 0
        %635 = vperm.xlu0 %634, %v617
        %v636 = vpop.permute.xlu0 %635
        %638 = vset.pattern.permute.xlu0 0
        %639 = vperm.xlu0 %638, %v618
        %v640 = vpop.permute.xlu0 %639
        %642 = vset.pattern.permute.xlu0 0
        %643 = vperm.xlu0 %642, %v619
        %v644 = vpop.permute.xlu0 %643
        %646 = vset.pattern.permute.xlu0 0
        %647 = vperm.xlu0 %646, %v620
        %v648 = vpop.permute.xlu0 %647
        %650 = vset.pattern.permute.xlu0 0
        %651 = vperm.xlu0 %650, %v621
        %v652 = vpop.permute.xlu0 %651
        %v654 = vmul.f32 %v246, %v624
        %v655 = vmul.f32 %v247, %v628
        %v656 = vmul.f32 %v248, %v632
        %v657 = vmul.f32 %v249, %v636
        %v658 = vmul.f32 %v250, %v640
        %v659 = vmul.f32 %v251, %v644
        %v660 = vmul.f32 %v252, %v648
        %v661 = vmul.f32 %v253, %v652
        %670 = vrot.lane.b32.xlu0 %v654, 127
        %v671 = vpop.permute.xlu0 %670
        %672 = vrot.lane.b32.xlu0 %v655, 127
        %v673 = vpop.permute.xlu0 %672
        %674 = vrot.lane.b32.xlu0 %v656, 127
        %v675 = vpop.permute.xlu0 %674
        %676 = vrot.lane.b32.xlu0 %v657, 127
        %v677 = vpop.permute.xlu0 %676
        %678 = vrot.lane.b32.xlu0 %v658, 127
        %v679 = vpop.permute.xlu0 %678
        %680 = vrot.lane.b32.xlu0 %v659, 127
        %v681 = vpop.permute.xlu0 %680
        %682 = vrot.lane.b32.xlu0 %v660, 127
        %v683 = vpop.permute.xlu0 %682
        %684 = vrot.lane.b32.xlu0 %v661, 127
        %v685 = vpop.permute.xlu0 %684
        %v694 = vadd.f32 %v598, %v671
        %v695 = vadd.f32 %v599, %v673
        %v696 = vadd.f32 %v600, %v675
        %v697 = vadd.f32 %v601, %v677
        %v698 = vadd.f32 %v602, %v679
        %v699 = vadd.f32 %v603, %v681
        %v700 = vadd.f32 %v604, %v683
        %v701 = vadd.f32 %v605, %v685
        %v710 = vperm.slane %v190, 0
        %v711 = vperm.slane %v191, 0
        %v712 = vperm.slane %v192, 0
        %v713 = vperm.slane %v193, 0
        %v714 = vperm.slane %v194, 0
        %v715 = vperm.slane %v195, 0
        %v716 = vperm.slane %v196, 0
        %v717 = vperm.slane %v197, 0
        %718 = vset.pattern.permute.xlu0 0
        %719 = vperm.xlu0 %718, %v710
        %v720 = vpop.permute.xlu0 %719
        %722 = vset.pattern.permute.xlu0 0
        %723 = vperm.xlu0 %722, %v711
        %v724 = vpop.permute.xlu0 %723
        %726 = vset.pattern.permute.xlu0 0
        %727 = vperm.xlu0 %726, %v712
        %v728 = vpop.permute.xlu0 %727
        %730 = vset.pattern.permute.xlu0 0
        %731 = vperm.xlu0 %730, %v713
        %v732 = vpop.permute.xlu0 %731
        %734 = vset.pattern.permute.xlu0 0
        %735 = vperm.xlu0 %734, %v714
        %v736 = vpop.permute.xlu0 %735
        %738 = vset.pattern.permute.xlu0 0
        %739 = vperm.xlu0 %738, %v715
        %v740 = vpop.permute.xlu0 %739
        %742 = vset.pattern.permute.xlu0 0
        %743 = vperm.xlu0 %742, %v716
        %v744 = vpop.permute.xlu0 %743
        %746 = vset.pattern.permute.xlu0 0
        %747 = vperm.xlu0 %746, %v717
        %v748 = vpop.permute.xlu0 %747
        %v750 = vmul.f32 %v214, %v720
        %v751 = vmul.f32 %v215, %v720
        %v752 = vmul.f32 %v216, %v724
        %v753 = vmul.f32 %v217, %v724
        %v754 = vmul.f32 %v218, %v728
        %v755 = vmul.f32 %v219, %v728
        %v756 = vmul.f32 %v220, %v732
        %v757 = vmul.f32 %v221, %v732
        %v758 = vmul.f32 %v222, %v736
        %v759 = vmul.f32 %v223, %v736
        %v760 = vmul.f32 %v224, %v740
        %v761 = vmul.f32 %v225, %v740
        %v762 = vmul.f32 %v226, %v744
        %v763 = vmul.f32 %v227, %v744
        %v764 = vmul.f32 %v228, %v748
        %v765 = vmul.f32 %v229, %v748
        %vm782 = vcmask 1046528
        %v783 = vrot.slane %v750, 1
        %v784 = vrot.slane %v751, 1
        %v785 = vsel %vm782, %v783, %v784
        %v786 = vrot.slane %v752, 1
        %v787 = vrot.slane %v753, 1
        %v788 = vsel %vm782, %v786, %v787
        %v789 = vrot.slane %v754, 1
        %v790 = vrot.slane %v755, 1
        %v791 = vsel %vm782, %v789, %v790
        %v792 = vrot.slane %v756, 1
        %v793 = vrot.slane %v757, 1
        %v794 = vsel %vm782, %v792, %v793
        %v795 = vrot.slane %v758, 1
        %v796 = vrot.slane %v759, 1
        %v797 = vsel %vm782, %v795, %v796
        %v798 = vrot.slane %v760, 1
        %v799 = vrot.slane %v761, 1
        %v800 = vsel %vm782, %v798, %v799
        %v801 = vrot.slane %v762, 1
        %v802 = vrot.slane %v763, 1
        %v803 = vsel %vm782, %v801, %v802
        %v804 = vrot.slane %v764, 1
        %v805 = vrot.slane %v765, 1
        %v806 = vsel %vm782, %v804, %v805
        %v815 = vadd.f32 %v694, %v785
        %v816 = vadd.f32 %v695, %v788
        %v817 = vadd.f32 %v696, %v791
        %v818 = vadd.f32 %v697, %v794
        %v819 = vadd.f32 %v698, %v797
        %v820 = vadd.f32 %v699, %v800
        %v821 = vadd.f32 %v700, %v803
        %v822 = vadd.f32 %v701, %v806
        %v831 = vperm.slane %v198, 0
        %v832 = vperm.slane %v199, 0
        %v833 = vperm.slane %v200, 0
        %v834 = vperm.slane %v201, 0
        %v835 = vperm.slane %v202, 0
        %v836 = vperm.slane %v203, 0
        %v837 = vperm.slane %v204, 0
        %v838 = vperm.slane %v205, 0
        %839 = vset.pattern.permute.xlu0 0
        %840 = vperm.xlu0 %839, %v831
        %v841 = vpop.permute.xlu0 %840
        %843 = vset.pattern.permute.xlu0 0
        %844 = vperm.xlu0 %843, %v832
        %v845 = vpop.permute.xlu0 %844
        %847 = vset.pattern.permute.xlu0 0
        %848 = vperm.xlu0 %847, %v833
        %v849 = vpop.permute.xlu0 %848
        %851 = vset.pattern.permute.xlu0 0
        %852 = vperm.xlu0 %851, %v834
        %v853 = vpop.permute.xlu0 %852
        %855 = vset.pattern.permute.xlu0 0
        %856 = vperm.xlu0 %855, %v835
        %v857 = vpop.permute.xlu0 %856
        %859 = vset.pattern.permute.xlu0 0
        %860 = vperm.xlu0 %859, %v836
        %v861 = vpop.permute.xlu0 %860
        %863 = vset.pattern.permute.xlu0 0
        %864 = vperm.xlu0 %863, %v837
        %v865 = vpop.permute.xlu0 %864
        %867 = vset.pattern.permute.xlu0 0
        %868 = vperm.xlu0 %867, %v838
        %v869 = vpop.permute.xlu0 %868
        %v871 = vmul.f32 %v230, %v841
        %v872 = vmul.f32 %v231, %v841
        %v873 = vmul.f32 %v232, %v845
        %v874 = vmul.f32 %v233, %v845
        %v875 = vmul.f32 %v234, %v849
        %v876 = vmul.f32 %v235, %v849
        %v877 = vmul.f32 %v236, %v853
        %v878 = vmul.f32 %v237, %v853
        %v879 = vmul.f32 %v238, %v857
        %v880 = vmul.f32 %v239, %v857
        %v881 = vmul.f32 %v240, %v861
        %v882 = vmul.f32 %v241, %v861
        %v883 = vmul.f32 %v242, %v865
        %v884 = vmul.f32 %v243, %v865
        %v885 = vmul.f32 %v244, %v869
        %v886 = vmul.f32 %v245, %v869
        %v903 = vrot.slane %v871, 1
        %v904 = vrot.slane %v872, 1
        %v905 = vsel %vm782, %v903, %v904
        %v906 = vrot.slane %v873, 1
        %v907 = vrot.slane %v874, 1
        %v908 = vsel %vm782, %v906, %v907
        %v909 = vrot.slane %v875, 1
        %v910 = vrot.slane %v876, 1
        %v911 = vsel %vm782, %v909, %v910
        %v912 = vrot.slane %v877, 1
        %v913 = vrot.slane %v878, 1
        %v914 = vsel %vm782, %v912, %v913
        %v915 = vrot.slane %v879, 1
        %v916 = vrot.slane %v880, 1
        %v917 = vsel %vm782, %v915, %v916
        %v918 = vrot.slane %v881, 1
        %v919 = vrot.slane %v882, 1
        %v920 = vsel %vm782, %v918, %v919
        %v921 = vrot.slane %v883, 1
        %v922 = vrot.slane %v884, 1
        %v923 = vsel %vm782, %v921, %v922
        %v924 = vrot.slane %v885, 1
        %v925 = vrot.slane %v886, 1
        %v926 = vsel %vm782, %v924, %v925
        %v935 = vadd.f32 %v815, %v905
        %v936 = vadd.f32 %v816, %v908
        %v937 = vadd.f32 %v817, %v911
        %v938 = vadd.f32 %v818, %v914
        %v939 = vadd.f32 %v819, %v917
        %v940 = vadd.f32 %v820, %v920
        %v941 = vadd.f32 %v821, %v923
        %v942 = vadd.f32 %v822, %v926
        %v951 = vperm.slane %v206, 0
        %v952 = vperm.slane %v207, 0
        %v953 = vperm.slane %v208, 0
        %v954 = vperm.slane %v209, 0
        %v955 = vperm.slane %v210, 0
        %v956 = vperm.slane %v211, 0
        %v957 = vperm.slane %v212, 0
        %v958 = vperm.slane %v213, 0
        %959 = vset.pattern.permute.xlu0 0
        %960 = vperm.xlu0 %959, %v951
        %v961 = vpop.permute.xlu0 %960
        %963 = vset.pattern.permute.xlu0 0
        %964 = vperm.xlu0 %963, %v952
        %v965 = vpop.permute.xlu0 %964
        %967 = vset.pattern.permute.xlu0 0
        %968 = vperm.xlu0 %967, %v953
        %v969 = vpop.permute.xlu0 %968
        %971 = vset.pattern.permute.xlu0 0
        %972 = vperm.xlu0 %971, %v954
        %v973 = vpop.permute.xlu0 %972
        %975 = vset.pattern.permute.xlu0 0
        %976 = vperm.xlu0 %975, %v955
        %v977 = vpop.permute.xlu0 %976
        %979 = vset.pattern.permute.xlu0 0
        %980 = vperm.xlu0 %979, %v956
        %v981 = vpop.permute.xlu0 %980
        %983 = vset.pattern.permute.xlu0 0
        %984 = vperm.xlu0 %983, %v957
        %v985 = vpop.permute.xlu0 %984
        %987 = vset.pattern.permute.xlu0 0
        %988 = vperm.xlu0 %987, %v958
        %v989 = vpop.permute.xlu0 %988
        %v991 = vmul.f32 %v214, %v961
        %v992 = vmul.f32 %v215, %v961
        %v993 = vmul.f32 %v216, %v965
        %v994 = vmul.f32 %v217, %v965
        %v995 = vmul.f32 %v218, %v969
        %v996 = vmul.f32 %v219, %v969
        %v997 = vmul.f32 %v220, %v973
        %v998 = vmul.f32 %v221, %v973
        %v999 = vmul.f32 %v222, %v977
        %v1000 = vmul.f32 %v223, %v977
        %v1001 = vmul.f32 %v224, %v981
        %v1002 = vmul.f32 %v225, %v981
        %v1003 = vmul.f32 %v226, %v985
        %v1004 = vmul.f32 %v227, %v985
        %v1005 = vmul.f32 %v228, %v989
        %v1006 = vmul.f32 %v229, %v989
        %v1023 = vrot.slane %v991, 1
        %v1024 = vrot.slane %v992, 1
        %v1025 = vsel %vm782, %v1023, %v1024
        %v1026 = vrot.slane %v993, 1
        %v1027 = vrot.slane %v994, 1
        %v1028 = vsel %vm782, %v1026, %v1027
        %v1029 = vrot.slane %v995, 1
        %v1030 = vrot.slane %v996, 1
        %v1031 = vsel %vm782, %v1029, %v1030
        %v1032 = vrot.slane %v997, 1
        %v1033 = vrot.slane %v998, 1
        %v1034 = vsel %vm782, %v1032, %v1033
        %v1035 = vrot.slane %v999, 1
        %v1036 = vrot.slane %v1000, 1
        %v1037 = vsel %vm782, %v1035, %v1036
        %v1038 = vrot.slane %v1001, 1
        %v1039 = vrot.slane %v1002, 1
        %v1040 = vsel %vm782, %v1038, %v1039
        %v1041 = vrot.slane %v1003, 1
        %v1042 = vrot.slane %v1004, 1
        %v1043 = vsel %vm782, %v1041, %v1042
        %v1044 = vrot.slane %v1005, 1
        %v1045 = vrot.slane %v1006, 1
        %v1046 = vsel %vm782, %v1044, %v1045
        %1047 = vrot.lane.b32.xlu0 %v1025, 127
        %v1048 = vpop.permute.xlu0 %1047
        %1049 = vrot.lane.b32.xlu0 %v1028, 127
        %v1050 = vpop.permute.xlu0 %1049
        %1051 = vrot.lane.b32.xlu0 %v1031, 127
        %v1052 = vpop.permute.xlu0 %1051
        %1053 = vrot.lane.b32.xlu0 %v1034, 127
        %v1054 = vpop.permute.xlu0 %1053
        %1055 = vrot.lane.b32.xlu0 %v1037, 127
        %v1056 = vpop.permute.xlu0 %1055
        %1057 = vrot.lane.b32.xlu0 %v1040, 127
        %v1058 = vpop.permute.xlu0 %1057
        %1059 = vrot.lane.b32.xlu0 %v1043, 127
        %v1060 = vpop.permute.xlu0 %1059
        %1061 = vrot.lane.b32.xlu0 %v1046, 127
        %v1062 = vpop.permute.xlu0 %1061
        %v1071 = vadd.f32 %v935, %v1048
        %v1072 = vadd.f32 %v936, %v1050
        %v1073 = vadd.f32 %v937, %v1052
        %v1074 = vadd.f32 %v938, %v1054
        %v1075 = vadd.f32 %v939, %v1056
        %v1076 = vadd.f32 %v940, %v1058
        %v1077 = vadd.f32 %v941, %v1060
        %v1078 = vadd.f32 %v942, %v1062
        %vm1079 = vcmask 64512
        %1080 = vst.msk [vmem:[%s136] sm:$0xff] %vm1079, %v1071
        %1081 = vst.msk [vmem:[%s136 + $0x8] sm:$0xff] %vm1079, %v1072
        %1082 = vst.msk [vmem:[%s136 + $0x10] sm:$0xff] %vm1079, %v1073
        %1083 = vst.msk [vmem:[%s136 + $0x18] sm:$0xff] %vm1079, %v1074
        %1084 = vst.msk [vmem:[%s136 + $0x20] sm:$0xff] %vm1079, %v1075
        %1085 = vst.msk [vmem:[%s136 + $0x28] sm:$0xff] %vm1079, %v1076
        %1086 = vst.msk [vmem:[%s136 + $0x30] sm:$0xff] %vm1079, %v1077
        %1087 = vst.msk [vmem:[%s136 + $0x38] sm:$0xff] %vm1079, %v1078
        %s1088 = sand.u32 %s71, 1
        %s1089 = scalar_lea.sflag [#allocation3], %s1088
        %s1090 = sand.u32 %s71, 1
        %s1091 = smul.addr %s1090, 64
        %s1092 = scalar_lea.vmem [#allocation2], %s1091
        // Predicated region
        $region29: #{tpu_custom_call.1} parent=27 // pred_check
          %p1093 = pneg %p81
        $region30: #{tpu_custom_call.1} parent=27 // pred_check_branch
          %1095 = sbr.rel (%p1093) target = $region32
        $region31: #{tpu_custom_call.1} parent=27 // pred_region
          %1097 = vsyncadd %s1089, 0
          %s1098 = smul.addr %s16, 8
          %s1099 = smul.addr %s1098, 8
          %s1100 = scalar_lea.hbm %s2, %s1099
          %s1101 = sshll.u32 %s1092, 4
          %s1102 = int_to_ptr.vmem [resolvable:$true] %s1101
          %s1103 = sshll.u32 %s1100, 4
          %s1104 = int_to_ptr.hbm [resolvable:$true] %s1103
          %1109 = dma.vmem_to_hbm [thread:$0]  %s1102, 1024, %s1104, %s1089, 128, 128, 8
        $region32: #{tpu_custom_call.1} parent=27 // pred_fallthru
          _
      $region28: #{tpu_custom_call.1} parent=5 // pred_fallthru
        _
      %p1110 = scmp.le.s32.totalorder 2, %s11
      // Predicated region
      $region33: #{tpu_custom_call.1} parent=5 // pred_check
        %p1111 = pneg %p1110
      $region34: #{tpu_custom_call.1} parent=5 // pred_check_branch
        %1113 = sbr.rel (%p1111) target = $region36
      $region35: #{tpu_custom_call.1} parent=5 // pred_region
        %s1114 = ssub.s32 %s11, 2
        // Predicated region
        $region37: #{tpu_custom_call.1} parent=35 // pred_check
          %p1115 = pneg %p87
        $region38: #{tpu_custom_call.1} parent=35 // pred_check_branch
          %1117 = sbr.rel (%p1115) target = $region40
        $region39: #{tpu_custom_call.1} parent=35 // pred_region
          %s1118 = sand.u32 %s72, 1
          %s1119 = scalar_lea.sflag [#allocation3], %s1118
          %s1120 = sand.u32 %s72, 1
          %s1121 = smul.addr %s1120, 64
          %s1122 = scalar_lea.vmem [#allocation2], %s1121
          %1124 = dma.done %s1119, 1024
        $region40: #{tpu_custom_call.1} parent=35 // pred_fallthru
          _
      $region36: #{tpu_custom_call.1} parent=5 // pred_fallthru
        _
    $region6: #{tpu_custom_call.1} parent=1 // loop_footer
      %s15 = sadd.s32 1, %s11
    $region7: #{tpu_custom_call.1} parent=1 // loop_footer_branch
      %10 = sbr.rel target = $region3
    $region8: #{tpu_custom_call.1} parent=1 // loop_exit
      _
    %1125 = vsyncpa [#allocation3], 1
    %s1126 = scalar_lea.sflag [#allocation3], 1
    %1127 = vsyncpa %s1126, 1

</llo_original>
